<compile_context>
chip_gen: v5e
topology: v5e:2x2
jax: 0.10.0
libtpu: 0.0.40
codegen_flags: <defaults>
</compile_context>

<pallas_src>
import jax
import jax.numpy as jnp
from jax.experimental import pallas as pl
from jax.experimental.pallas import tpu as pltpu

EPS = 1e-5


# ---------- stage 1: x @ w1 -> BN1(affine, batch stats) -> ReLU -> h (bf16) ----------
def _stage1_kernel(x_ref, w1_ref, gamma_ref, beta_ref, h_ref):
    inv_n = 1.0 / x_ref.shape[0]
    # Layer-1 feature slice [N, th]: bf16 operands, f32 MXU accumulation.
    h = jnp.dot(x_ref[...], w1_ref[...], preferred_element_type=jnp.float32)
    # BatchNorm1d(hidden, affine=True), biased variance over the (resident) batch.
    mean = jnp.sum(h, axis=0, keepdims=True) * inv_n
    hc = h - mean                                        # centered (stable variance)
    var = jnp.sum(hc * hc, axis=0, keepdims=True) * inv_n
    scale = gamma_ref[...] * jax.lax.rsqrt(var + EPS)    # fold affine into scale/shift
    h_ref[...] = jnp.maximum(hc * scale + beta_ref[...], 0.0).astype(h_ref.dtype)


# ---------- stage 2: h @ w2 (hidden reduction) -> BN2(no affine, batch stats) --------
def _stage2_kernel(h_ref, w2_ref, o_ref):
    k = pl.program_id(1)

    @pl.when(k == 0)
    def _init():
        o_ref[...] = jnp.zeros_like(o_ref)

    # Accumulate directly into the resident f32 output block (no scratch).
    o_ref[...] += jnp.dot(h_ref[...], w2_ref[...], preferred_element_type=jnp.float32)

    @pl.when(k == pl.num_programs(1) - 1)
    def _finalize():
        inv_n = 1.0 / o_ref.shape[0]
        z = o_ref[...]
        mean = jnp.sum(z, axis=0, keepdims=True) * inv_n
        zc = z - mean
        var = jnp.sum(zc * zc, axis=0, keepdims=True) * inv_n
        o_ref[...] = zc * jax.lax.rsqrt(var + EPS)


# ------------------------------- helpers ---------------------------------------------
def _round_up(v, m):
    return (v + m - 1) // m * m


def _pad_to(a, shape):
    pads = [(0, t - s) for s, t in zip(a.shape, shape)]
    if all(p == (0, 0) for p in pads):
        return a
    return jnp.pad(a, pads)


def _vmem_budget_bytes():
    """~85% of this generation's physical VMEM (conservative 64 MiB fallback)."""
    cap = 64 * 1024 * 1024  # valid on every generation (v7x has 64 MiB/TC)
    try:
        info = pltpu.get_tpu_info()
        cap = int(getattr(info, "vmem_capacity_bytes", cap))
    except Exception:
        pass
    return int(0.85 * cap)


def _largest_tile(dim_p):
    # Prefer 256-aligned tiles (v6e/v7x 2x256x256 MXU); 128 works everywhere.
    for cand in (512, 256, 128):
        if dim_p % cand == 0:
            return cand
    return dim_p


def _fit_tiles(n, d_in_p, th, tn, itemsize, budget):
    """Shrink (th, tn) until both per-stage VMEM working sets fit in budget."""
    def est(th_, tn_):
        s1 = (2 * n * d_in_p * itemsize        # resident x (budgeted at 2x)
              + 2 * d_in_p * th_ * itemsize    # w1 tile, double-buffered
              + 4 * th_ * 4                    # gamma/beta tiles
              + 2 * n * th_ * itemsize)        # h output tile
        s2 = (2 * n * th_ * itemsize           # h input tile
              + 2 * th_ * tn_ * itemsize       # w2 tile
              + 2 * n * tn_ * 4)               # resident f32 output tile
        return max(s1, s2)                     # stages run as separate pallas_calls

    while est(th, tn) > budget and max(th, tn) > 128:
        if tn >= th and tn > 128:
            tn //= 2
        else:
            th //= 2
    return th, tn


def _call_stage1(xc, w1p, gp, bp, *, th, vmem_limit, single_buffer_x):
    n, d_in_p = xc.shape
    hid_p = w1p.shape[1]
    x_kwargs = {}
    if single_buffer_x and hasattr(pl, "Buffered"):
        # x never changes across the grid -> second pipeline buffer is pure waste.
        x_kwargs = {"pipeline_mode": pl.Buffered(1)}
    return pl.pallas_call(
        _stage1_kernel,
        out_shape=jax.ShapeDtypeStruct((n, hid_p), w1p.dtype),  # bf16 intermediate
        grid_spec=pltpu.PrefetchScalarGridSpec(
            num_scalar_prefetch=0,
            grid=(hid_p // th,),
            in_specs=[
                pl.BlockSpec((n, d_in_p), lambda k: (0, 0), **x_kwargs),  # x resident
                pl.BlockSpec((d_in_p, th), lambda k: (0, k)),             # w1 slice
                pl.BlockSpec((1, th), lambda k: (0, k)),                  # gamma slice
                pl.BlockSpec((1, th), lambda k: (0, k)),                  # beta slice
            ],
            out_specs=pl.BlockSpec((n, th), lambda k: (0, k)),
        ),
        compiler_params=pltpu.CompilerParams(
            dimension_semantics=("parallel",),
            vmem_limit_bytes=vmem_limit,
        ),
    )(xc, w1p, gp, bp)


def _call_stage2(h, w2p, *, th, tn, vmem_limit):
    n, hid_p = h.shape
    out_p = w2p.shape[1]
    return pl.pallas_call(
        _stage2_kernel,
        out_shape=jax.ShapeDtypeStruct((n, out_p), jnp.float32),
        grid_spec=pltpu.PrefetchScalarGridSpec(
            num_scalar_prefetch=0,
            grid=(out_p // tn, hid_p // th),   # (parallel out tiles, hidden reduction)
            in_specs=[
                pl.BlockSpec((n, th), lambda j, k: (0, k)),   # h hidden-slice
                pl.BlockSpec((th, tn), lambda j, k: (k, j)),  # w2 tile
            ],
            out_specs=pl.BlockSpec((n, tn), lambda j, k: (0, j)),
        ),
        compiler_params=pltpu.CompilerParams(
            dimension_semantics=("parallel", "arbitrary"),
            vmem_limit_bytes=vmem_limit,
        ),
    )(h, w2p)


def projection_mlp_orchestra(x, w1_t, gamma, beta, w2_t, *, th=None, tn=None,
                             compute_dtype=jnp.bfloat16):
    """x: [N, in_dim]; w1_t: [in_dim, hidden]; gamma/beta: [hidden] or [1, hidden];
    w2_t: [hidden, out_dim]. Returns [N, out_dim] float32 (training-mode BN)."""
    n, d_in = x.shape
    hidden = w1_t.shape[1]
    out_dim = w2_t.shape[1]
    assert w1_t.shape[0] == d_in and w2_t.shape[0] == hidden

    gamma = jnp.reshape(gamma, (1, hidden)).astype(jnp.float32)
    beta = jnp.reshape(beta, (1, hidden)).astype(jnp.float32)

    # Pad feature dims to lane multiples. Padded columns/rows are zero and stay
    # inert through BN1/ReLU/layer2/BN2 (padded outputs are exactly 0), and are
    # sliced off at the end. The batch dimension is never padded (inv_n stays 1/N).
    d_in_p = _round_up(d_in, 128)
    hid_p = _round_up(hidden, 128)
    out_p = _round_up(out_dim, 128)

    xc = _pad_to(x, (n, d_in_p)).astype(compute_dtype)
    w1p = _pad_to(w1_t, (d_in_p, hid_p)).astype(compute_dtype)
    w2p = _pad_to(w2_t, (hid_p, out_p)).astype(compute_dtype)
    gp = _pad_to(gamma, (1, hid_p))
    bp = _pad_to(beta, (1, hid_p))

    budget = _vmem_budget_bytes()
    itemsize = jnp.dtype(compute_dtype).itemsize
    if th is None or tn is None:
        th_auto, tn_auto = _fit_tiles(n, d_in_p, _largest_tile(hid_p),
                                      _largest_tile(out_p), itemsize, budget)
        th = th if th is not None else th_auto
        tn = tn if tn is not None else tn_auto
    assert hid_p % th == 0 and out_p % tn == 0

    # Stage 1 (single compute of layer1 + BN1 + ReLU; bf16 intermediate in HBM).
    try:
        h = _call_stage1(xc, w1p, gp, bp, th=th, vmem_limit=budget,
                         single_buffer_x=True)
    except Exception:
        # Fallback if this Pallas build rejects pl.Buffered(1) single-buffering.
        h = _call_stage1(xc, w1p, gp, bp, th=th, vmem_limit=budget,
                         single_buffer_x=False)

    # Stage 2 (hidden reduction into resident f32 output tile + BN2).
    z = _call_stage2(h, w2p, th=th, tn=tn, vmem_limit=budget)

    return z if out_p == out_dim else z[:, :out_dim]


# ------------------------------- reference -------------------------------------------
def _reference(x, w1_t, gamma, beta, w2_t, compute_dtype=jnp.float32):
    """Pure-JAX reference with training-mode BN semantics; optionally mirrors the
    kernel's bf16-matmul / bf16-intermediate / f32-accumulate numeric path."""
    gamma = jnp.reshape(gamma, (1, -1)).astype(jnp.float32)
    beta = jnp.reshape(beta, (1, -1)).astype(jnp.float32)
    h = jnp.dot(x.astype(compute_dtype), w1_t.astype(compute_dtype),
                preferred_element_type=jnp.float32)
    m1 = jnp.mean(h, 0, keepdims=True)
    v1 = jnp.mean((h - m1) ** 2, 0, keepdims=True)
    h = (h - m1) * jax.lax.rsqrt(v1 + EPS) * gamma + beta
    h = jnp.maximum(h, 0.0)
    z = jnp.dot(h.astype(compute_dtype), w2_t.astype(compute_dtype),
                preferred_element_type=jnp.float32)
    m2 = jnp.mean(z, 0, keepdims=True)
    v2 = jnp.mean((z - m2) ** 2, 0, keepdims=True)
    return (z - m2) * jax.lax.rsqrt(v2 + EPS)


if __name__ == "__main__":
    # Small shapes consistent with the module (Linear -> BatchNorm1d over 2-D input).
    batch, in_dim, hidden_dim, out_dim = 8, 64, 256, 256

    key = jax.random.PRNGKey(0)
    kx, kw1, kw2, kg, kb = jax.random.split(key, 5)

    x = jax.random.normal(kx, (batch, in_dim), dtype=jnp.float32)
    bound1 = 1.0 / jnp.sqrt(in_dim)
    bound2 = 1.0 / jnp.sqrt(hidden_dim)
    w1_t = jax.random.uniform(kw1, (in_dim, hidden_dim), jnp.float32, -bound1, bound1)
    w2_t = jax.random.uniform(kw2, (hidden_dim, out_dim), jnp.float32, -bound2, bound2)
    gamma = 1.0 + 0.1 * jax.random.normal(kg, (1, hidden_dim), dtype=jnp.float32)
    beta = 0.1 * jax.random.normal(kb, (1, hidden_dim), dtype=jnp.float32)

    ref_matched = _reference(x, w1_t, gamma, beta, w2_t, compute_dtype=jnp.bfloat16)
    ref_f32 = _reference(x, w1_t, gamma, beta, w2_t, compute_dtype=jnp.float32)

    # (a) small tiles so the toy shapes exercise both grid axes (stage-2 grid = (2, 2))
    out_small = projection_mlp_orchestra(x, w1_t, gamma, beta, w2_t, th=128, tn=128)
    out_small = jax.block_until_ready(out_small)
    assert out_small.shape == (batch, out_dim)
    assert jnp.allclose(out_small, ref_matched, atol=2e-3, rtol=2e-3), \
        "tiled kernel mismatch vs bf16-matched reference"
    assert jnp.allclose(out_small, ref_f32, atol=5e-2, rtol=5e-2), \
        "tiled kernel mismatch vs f32 reference"

    # (b) auto (generation-aware) tile selection
    out_auto = projection_mlp_orchestra(x, w1_t, gamma, beta, w2_t)
    out_auto = jax.block_until_ready(out_auto)
    assert out_auto.shape == (batch, out_dim)
    assert jnp.allclose(out_auto, ref_matched, atol=2e-3, rtol=2e-3), \
        "auto-tiled kernel mismatch vs bf16-matched reference"

    print("KERNEL_OK")
</pallas_src>

<mosaic_0001>
module attributes {stable_mosaic.version = 11 : i64} {
  func.func @_stage1_kernel(%arg0: i32, %arg1: memref<8x128xbf16, #tpu.memory_space<vmem>>, %arg2: memref<128x128xbf16, #tpu.memory_space<vmem>>, %arg3: memref<1x128xf32, #tpu.memory_space<vmem>>, %arg4: memref<1x128xf32, #tpu.memory_space<vmem>>, %arg5: memref<8x128xbf16, #tpu.memory_space<vmem>>) attributes {dimension_semantics = [#tpu.dimension_semantics<parallel>], iteration_bounds = array<i64: 2>, scalar_prefetch = 0 : i64, scratch_operands = 0 : i64, tpu.core_type = #tpu.core_type<tc>, window_params = [{pipeline_mode = #tpu.pipeline_mode<synchronous>, transform_indices = @transform_0, window_bounds = array<i64: 8, 128>}, {transform_indices = @transform_1, window_bounds = array<i64: 128, 128>}, {transform_indices = @transform_2, window_bounds = array<i64: 1, 128>}, {transform_indices = @transform_3, window_bounds = array<i64: 1, 128>}, {transform_indices = @transform_4, window_bounds = array<i64: 8, 128>}]} {
    %c0 = arith.constant 0 : index
    %c0_0 = arith.constant 0 : index
    %0 = vector.load %arg1[%c0, %c0_0] : memref<8x128xbf16, #tpu.memory_space<vmem>>, vector<8x128xbf16>
    %c0_1 = arith.constant 0 : index
    %c0_2 = arith.constant 0 : index
    %1 = vector.load %arg2[%c0_1, %c0_2] : memref<128x128xbf16, #tpu.memory_space<vmem>>, vector<128x128xbf16>
    %cst = arith.constant dense<0.000000e+00> : vector<8x128xf32>
    %2 = tpu.matmul %0, %1, %cst {dimension_numbers = #tpu.dot_dimension_numbers<[1], [0], [0], [1], [0, 0, 1, 1], [], []>} : vector<8x128xbf16>, vector<128x128xbf16>, vector<8x128xf32> -> vector<8x128xf32>
    %cst_3 = arith.constant dense<0.000000e+00> : vector<128xf32>
    %3 = vector.multi_reduction <add>, %2, %cst_3 [0] : vector<8x128xf32> to vector<128xf32>
    %4 = vector.shape_cast %3 : vector<128xf32> to vector<1x128xf32>
    %cst_4 = arith.constant 1.250000e-01 : f32
    %5 = vector.broadcast %cst_4 : f32 to vector<1x128xf32>
    %6 = arith.mulf %4, %5 : vector<1x128xf32>
    %7 = vector.broadcast %6 : vector<1x128xf32> to vector<8x128xf32>
    %8 = arith.subf %2, %7 : vector<8x128xf32>
    %9 = arith.mulf %8, %8 : vector<8x128xf32>
    %cst_5 = arith.constant dense<0.000000e+00> : vector<128xf32>
    %10 = vector.multi_reduction <add>, %9, %cst_5 [0] : vector<8x128xf32> to vector<128xf32>
    %11 = vector.shape_cast %10 : vector<128xf32> to vector<1x128xf32>
    %cst_6 = arith.constant 1.250000e-01 : f32
    %12 = vector.broadcast %cst_6 : f32 to vector<1x128xf32>
    %13 = arith.mulf %11, %12 : vector<1x128xf32>
    %c0_7 = arith.constant 0 : index
    %c0_8 = arith.constant 0 : index
    %14 = vector.load %arg3[%c0_7, %c0_8] : memref<1x128xf32, #tpu.memory_space<vmem>>, vector<1x128xf32>
    %cst_9 = arith.constant 9.99999974E-6 : f32
    %15 = vector.broadcast %cst_9 : f32 to vector<1x128xf32>
    %16 = arith.addf %13, %15 : vector<1x128xf32>
    %17 = math.rsqrt %16 : vector<1x128xf32>
    %18 = arith.mulf %14, %17 : vector<1x128xf32>
    %19 = vector.broadcast %18 : vector<1x128xf32> to vector<8x128xf32>
    %20 = arith.mulf %8, %19 : vector<8x128xf32>
    %c0_10 = arith.constant 0 : index
    %c0_11 = arith.constant 0 : index
    %21 = vector.load %arg4[%c0_10, %c0_11] : memref<1x128xf32, #tpu.memory_space<vmem>>, vector<1x128xf32>
    %22 = vector.broadcast %21 : vector<1x128xf32> to vector<8x128xf32>
    %23 = arith.addf %20, %22 : vector<8x128xf32>
    %cst_12 = arith.constant 0.000000e+00 : f32
    %24 = vector.broadcast %cst_12 : f32 to vector<8x128xf32>
    %25 = arith.maximumf %23, %24 : vector<8x128xf32>
    %26 = arith.truncf %25 : vector<8x128xf32> to vector<8x128xbf16>
    %c0_13 = arith.constant 0 : index
    %c0_14 = arith.constant 0 : index
    %27 = vector.load %arg5[%c0_13, %c0_14] : memref<8x128xbf16, #tpu.memory_space<vmem>>, vector<8x128xbf16>
    tpu.vector_store %arg5[%c0_13, %c0_14], %26 {strides = array<i32>} : memref<8x128xbf16, #tpu.memory_space<vmem>>, vector<8x128xbf16>,
    return
  }
  func.func @transform_0(%arg0: i32) -> (i32, i32) {
    %c0_i32 = arith.constant 0 : i32
    %c0_i32_0 = arith.constant 0 : i32
    %c0_i32_1 = arith.constant 0 : i32
    return %c0_i32, %c0_i32_0 : i32, i32
  }
  func.func @transform_1(%arg0: i32) -> (i32, i32) {
    %c0_i32 = arith.constant 0 : i32
    %c0_i32_0 = arith.constant 0 : i32
    return %c0_i32, %arg0 : i32, i32
  }
  func.func @transform_2(%arg0: i32) -> (i32, i32) {
    %c0_i32 = arith.constant 0 : i32
    %c0_i32_0 = arith.constant 0 : i32
    return %c0_i32, %arg0 : i32, i32
  }
  func.func @transform_3(%arg0: i32) -> (i32, i32) {
    %c0_i32 = arith.constant 0 : i32
    %c0_i32_0 = arith.constant 0 : i32
    return %c0_i32, %arg0 : i32, i32
  }
  func.func @transform_4(%arg0: i32) -> (i32, i32) {
    %c0_i32 = arith.constant 0 : i32
    %c0_i32_0 = arith.constant 0 : i32
    return %c0_i32, %arg0 : i32, i32
  }
}

module attributes {stable_mosaic.version = 11 : i64} {
  func.func @_stage1_kernel(%arg0: i32, %arg1: memref<8x128xbf16, #tpu.memory_space<vmem>>, %arg2: memref<128x128xbf16, #tpu.memory_space<vmem>>, %arg3: memref<1x128xf32, #tpu.memory_space<vmem>>, %arg4: memref<1x128xf32, #tpu.memory_space<vmem>>, %arg5: memref<8x128xbf16, #tpu.memory_space<vmem>>) attributes {dimension_semantics = [#tpu.dimension_semantics<parallel>], iteration_bounds = array<i64: 2>, scalar_prefetch = 0 : i64, scratch_operands = 0 : i64, tpu.core_type = #tpu.core_type<tc>, window_params = [{pipeline_mode = #tpu.pipeline_mode<synchronous>, transform_indices = @transform_0, window_bounds = array<i64: 8, 128>}, {transform_indices = @transform_1, window_bounds = array<i64: 128, 128>}, {transform_indices = @transform_2, window_bounds = array<i64: 1, 128>}, {transform_indices = @transform_3, window_bounds = array<i64: 1, 128>}, {transform_indices = @transform_4, window_bounds = array<i64: 8, 128>}]} {
    %c0 = arith.constant 0 : index
    %c0_0 = arith.constant 0 : index
    %0 = vector.load %arg1[%c0, %c0_0] : memref<8x128xbf16, #tpu.memory_space<vmem>>, vector<8x128xbf16>
    %c0_1 = arith.constant 0 : index
    %c0_2 = arith.constant 0 : index
    %1 = vector.load %arg2[%c0_1, %c0_2] : memref<128x128xbf16, #tpu.memory_space<vmem>>, vector<128x128xbf16>
    %cst = arith.constant dense<0.000000e+00> : vector<8x128xf32>
    %2 = tpu.matmul %0, %1, %cst {dimension_numbers = #tpu.dot_dimension_numbers<[1], [0], [0], [1], [0, 0, 1, 1], [], []>} : vector<8x128xbf16>, vector<128x128xbf16>, vector<8x128xf32> -> vector<8x128xf32>
    %cst_3 = arith.constant dense<0.000000e+00> : vector<128xf32>
    %3 = vector.multi_reduction <add>, %2, %cst_3 [0] : vector<8x128xf32> to vector<128xf32>
    %4 = vector.shape_cast %3 : vector<128xf32> to vector<1x128xf32>
    %cst_4 = arith.constant 1.250000e-01 : f32
    %5 = vector.broadcast %cst_4 : f32 to vector<1x128xf32>
    %6 = arith.mulf %4, %5 : vector<1x128xf32>
    %7 = vector.broadcast %6 : vector<1x128xf32> to vector<8x128xf32>
    %8 = arith.subf %2, %7 : vector<8x128xf32>
    %9 = arith.mulf %8, %8 : vector<8x128xf32>
    %cst_5 = arith.constant dense<0.000000e+00> : vector<128xf32>
    %10 = vector.multi_reduction <add>, %9, %cst_5 [0] : vector<8x128xf32> to vector<128xf32>
    %11 = vector.shape_cast %10 : vector<128xf32> to vector<1x128xf32>
    %cst_6 = arith.constant 1.250000e-01 : f32
    %12 = vector.broadcast %cst_6 : f32 to vector<1x128xf32>
    %13 = arith.mulf %11, %12 : vector<1x128xf32>
    %c0_7 = arith.constant 0 : index
    %c0_8 = arith.constant 0 : index
    %14 = vector.load %arg3[%c0_7, %c0_8] : memref<1x128xf32, #tpu.memory_space<vmem>>, vector<1x128xf32>
    %cst_9 = arith.constant 9.99999974E-6 : f32
    %15 = vector.broadcast %cst_9 : f32 to vector<1x128xf32>
    %16 = arith.addf %13, %15 : vector<1x128xf32>
    %17 = math.rsqrt %16 : vector<1x128xf32>
    %18 = arith.mulf %14, %17 : vector<1x128xf32>
    %19 = vector.broadcast %18 : vector<1x128xf32> to vector<8x128xf32>
    %20 = arith.mulf %8, %19 : vector<8x128xf32>
    %c0_10 = arith.constant 0 : index
    %c0_11 = arith.constant 0 : index
    %21 = vector.load %arg4[%c0_10, %c0_11] : memref<1x128xf32, #tpu.memory_space<vmem>>, vector<1x128xf32>
    %22 = vector.broadcast %21 : vector<1x128xf32> to vector<8x128xf32>
    %23 = arith.addf %20, %22 : vector<8x128xf32>
    %cst_12 = arith.constant 0.000000e+00 : f32
    %24 = vector.broadcast %cst_12 : f32 to vector<8x128xf32>
    %25 = arith.maximumf %23, %24 : vector<8x128xf32>
    %26 = arith.truncf %25 : vector<8x128xf32> to vector<8x128xbf16>
    %c0_13 = arith.constant 0 : index
    %c0_14 = arith.constant 0 : index
    %27 = vector.load %arg5[%c0_13, %c0_14] : memref<8x128xbf16, #tpu.memory_space<vmem>>, vector<8x128xbf16>
    tpu.vector_store %arg5[%c0_13, %c0_14], %26 {strides = array<i32>} : memref<8x128xbf16, #tpu.memory_space<vmem>>, vector<8x128xbf16>,
    return
  }
  func.func @transform_0(%arg0: i32) -> (i32, i32) {
    %c0_i32 = arith.constant 0 : i32
    %c0_i32_0 = arith.constant 0 : i32
    %c0_i32_1 = arith.constant 0 : i32
    return %c0_i32, %c0_i32_0 : i32, i32
  }
  func.func @transform_1(%arg0: i32) -> (i32, i32) {
    %c0_i32 = arith.constant 0 : i32
    %c0_i32_0 = arith.constant 0 : i32
    return %c0_i32, %arg0 : i32, i32
  }
  func.func @transform_2(%arg0: i32) -> (i32, i32) {
    %c0_i32 = arith.constant 0 : i32
    %c0_i32_0 = arith.constant 0 : i32
    return %c0_i32, %arg0 : i32, i32
  }
  func.func @transform_3(%arg0: i32) -> (i32, i32) {
    %c0_i32 = arith.constant 0 : i32
    %c0_i32_0 = arith.constant 0 : i32
    return %c0_i32, %arg0 : i32, i32
  }
  func.func @transform_4(%arg0: i32) -> (i32, i32) {
    %c0_i32 = arith.constant 0 : i32
    %c0_i32_0 = arith.constant 0 : i32
    return %c0_i32, %arg0 : i32, i32
  }
}

</mosaic_0001>

<llo_original>
// kernel: tpu_custom_call.1
$region0: #{tpu_custom_call.1}
  #allocation0 [shape = 'u32[]', space=smem, size = 0x4, offset = 0x4, fixed_abs, tag = 'smem constant byte address 0x4 - core index']
  #allocation1 [shape = 'u32[72,128]{1,0:T(1,128)}', space=vmem, size = 0x9000, scoped, tag = 'internal scratch']
  %s0 = inlined_call_operand.hbm [shape: bf16[8,128], index: 0, kind: input, shape index: {}]
  %s1 = inlined_call_operand.hbm [shape: bf16[128,256], index: 1, kind: input, shape index: {}]
  %s2 = inlined_call_operand.hbm [shape: f32[1,256], index: 2, kind: input, shape index: {}]
  %s3 = inlined_call_operand.vmem [shape: f32[1,256], index: 3, kind: input, shape index: {}]
  %s4 = inlined_call_operand.hbm [shape: bf16[8,256], index: 4, kind: output, shape index: {}]
  %s5 = sld [smem:[#allocation0]]
  $region61: #{tpu_custom_call.1} parent=0
    _
  %s7 = ssub.s32 1, %s5
  %s8 = scalar_select 0, %s7, %s5
  $region1: #{tpu_custom_call.1} parent=0
    #allocation2 [shape = 'u8[2048]{0}', space=vmem, size = 0x800, scoped, tag = 'input window, operand 0, single buffered']
    #allocation3 [shape = 's32[2]{0}', space=sflag, size = 0x8, scoped, tag = 'scoped memory for tpu_custom_call.1']
    #allocation4 [shape = 's32[2]{0}', space=sflag, size = 0x8, scoped, tag = 'scoped memory for tpu_custom_call.1']
    #allocation5 [shape = 'u8[65536]{0}', space=vmem, size = 0x10000, scoped, tag = 'input window, operand 1']
    #allocation6 [shape = 's32[2]{0}', space=sflag, size = 0x8, scoped, tag = 'scoped memory for tpu_custom_call.1']
    #allocation7 [shape = 'u8[1024]{0}', space=vmem, size = 0x400, scoped, tag = 'input window, operand 2']
    #allocation8 [shape = 'u8[4096]{0}', space=vmem, size = 0x1000, scoped, tag = 'output window, operand 0']
    %9 = vsyncpa [#allocation3], 0
    %10 = vsyncpa [#allocation6], 0
    %s11 = scalar_lea.sflag [#allocation6], 1
    %12 = vsyncpa %s11, 0
    %13 = vsyncpa [#allocation4], 0
    %s14 = scalar_lea.sflag [#allocation4], 1
    %15 = vsyncpa %s14, 0
    loop: start=0, step=1, limit=4
    $region2: #{tpu_custom_call.1} parent=1 // loop_pre_header
      _
    $region3: #{tpu_custom_call.1} parent=1 // loop_header
      %s17 = sphi 0, %s21
      %p18 = scmp.ge.s32.totalorder %s17, 4
      %s25 = sphi 0, %s25
      %s27 = sphi 0, %s25
      %s28 = sphi 0, %s27
      %s42 = sphi 0, %s28
      %s48 = sphi 0, %s50
      %s51 = sphi 0, %s48
      %s52 = sphi 0, %s51
      %s68 = sphi 0, %s52
      %s74 = sphi 0, %s76
      %s77 = sphi 0, %s74
      %s78 = sphi 0, %s77
      %s94 = sphi 0, %s78
      %s100 = sphi 0, %s102
      %s103 = sphi 0, %s100
      %s104 = sphi 0, %s103
      %s120 = sphi 0, %s104
      %s126 = sphi 0, %s128
      %s129 = sphi 0, %s126
      %s130 = sphi 0, %s129
      %s146 = sphi 0, %s130
    $region4: #{tpu_custom_call.1} parent=1 // loop_header_branch
      %20 = sbr.rel (%p18) target = $region8
    $region5: #{tpu_custom_call.1} parent=1 // loop_body
      %s22 = ssub.s32 %s17, 1
      %s23 = ssub.s32 %s17, 2
      %s24 = sadd.s32 %s17, 1
      %s26 = sadd.s32 %s25, 1
      %p29 = scmp.eq.s32.totalorder %s17, 1
      %p30 = scmp.ne.s32.totalorder %s25, %s27
      %p31 = scmp.eq.s32.totalorder %s17, 0
      %p32 = por %p30, %p31
      %p33 = scmp.ne.s32.totalorder %s25, %s27
      %p34 = scmp.eq.s32.totalorder %s22, 1
      %p35 = por %p33, %p34
      %p36 = scmp.ne.s32.totalorder %s27, %s28
      %p37 = scmp.eq.s32.totalorder %s22, 0
      %p38 = por %p36, %p37
      %p39 = scmp.ne.s32.totalorder %s27, %s28
      %p40 = scmp.eq.s32.totalorder %s23, 1
      %p41 = por %p39, %p40
      %p43 = scmp.ne.s32.totalorder %s28, %s42
      %p44 = scmp.eq.s32.totalorder %s23, 0
      %p45 = por %p43, %p44
      %s46 = ssub.s32 %s17, %s24
      %p47 = scmp.eq.s32.totalorder %s46, 0
      %s49 = sadd.s32 %s48, 1
      %s50 = scalar_select %p47, %s48, %s49
      %p53 = pneg %p47
      %p54 = scmp.eq.s32.totalorder %s17, 1
      %p55 = por %p53, %p54
      %p56 = scmp.ne.s32.totalorder %s48, %s51
      %p57 = scmp.eq.s32.totalorder %s17, 0
      %p58 = por %p56, %p57
      %p59 = scmp.ne.s32.totalorder %s48, %s51
      %p60 = scmp.eq.s32.totalorder %s22, 1
      %p61 = por %p59, %p60
      %p62 = scmp.ne.s32.totalorder %s51, %s52
      %p63 = scmp.eq.s32.totalorder %s22, 0
      %p64 = por %p62, %p63
      %p65 = scmp.ne.s32.totalorder %s51, %s52
      %p66 = scmp.eq.s32.totalorder %s23, 1
      %p67 = por %p65, %p66
      %p69 = scmp.ne.s32.totalorder %s52, %s68
      %p70 = scmp.eq.s32.totalorder %s23, 0
      %p71 = por %p69, %p70
      %s72 = ssub.s32 %s17, %s24
      %p73 = scmp.eq.s32.totalorder %s72, 0
      %s75 = sadd.s32 %s74, 1
      %s76 = scalar_select %p73, %s74, %s75
      %p79 = pneg %p73
      %p80 = scmp.eq.s32.totalorder %s17, 1
      %p81 = por %p79, %p80
      %p82 = scmp.ne.s32.totalorder %s74, %s77
      %p83 = scmp.eq.s32.totalorder %s17, 0
      %p84 = por %p82, %p83
      %p85 = scmp.ne.s32.totalorder %s74, %s77
      %p86 = scmp.eq.s32.totalorder %s22, 1
      %p87 = por %p85, %p86
      %p88 = scmp.ne.s32.totalorder %s77, %s78
      %p89 = scmp.eq.s32.totalorder %s22, 0
      %p90 = por %p88, %p89
      %p91 = scmp.ne.s32.totalorder %s77, %s78
      %p92 = scmp.eq.s32.totalorder %s23, 1
      %p93 = por %p91, %p92
      %p95 = scmp.ne.s32.totalorder %s78, %s94
      %p96 = scmp.eq.s32.totalorder %s23, 0
      %p97 = por %p95, %p96
      %s98 = ssub.s32 %s17, %s24
      %p99 = scmp.eq.s32.totalorder %s98, 0
      %s101 = sadd.s32 %s100, 1
      %s102 = scalar_select %p99, %s100, %s101
      %p105 = pneg %p99
      %p106 = scmp.eq.s32.totalorder %s17, 1
      %p107 = por %p105, %p106
      %p108 = scmp.ne.s32.totalorder %s100, %s103
      %p109 = scmp.eq.s32.totalorder %s17, 0
      %p110 = por %p108, %p109
      %p111 = scmp.ne.s32.totalorder %s100, %s103
      %p112 = scmp.eq.s32.totalorder %s22, 1
      %p113 = por %p111, %p112
      %p114 = scmp.ne.s32.totalorder %s103, %s104
      %p115 = scmp.eq.s32.totalorder %s22, 0
      %p116 = por %p114, %p115
      %p117 = scmp.ne.s32.totalorder %s103, %s104
      %p118 = scmp.eq.s32.totalorder %s23, 1
      %p119 = por %p117, %p118
      %p121 = scmp.ne.s32.totalorder %s104, %s120
      %p122 = scmp.eq.s32.totalorder %s23, 0
      %p123 = por %p121, %p122
      %s124 = ssub.s32 %s17, %s24
      %p125 = scmp.eq.s32.totalorder %s124, 0
      %s127 = sadd.s32 %s126, 1
      %s128 = scalar_select %p125, %s126, %s127
      %p131 = pneg %p125
      %p132 = scmp.eq.s32.totalorder %s17, 1
      %p133 = por %p131, %p132
      %p134 = scmp.ne.s32.totalorder %s126, %s129
      %p135 = scmp.eq.s32.totalorder %s17, 0
      %p136 = por %p134, %p135
      %p137 = scmp.ne.s32.totalorder %s126, %s129
      %p138 = scmp.eq.s32.totalorder %s22, 1
      %p139 = por %p137, %p138
      %p140 = scmp.ne.s32.totalorder %s129, %s130
      %p141 = scmp.eq.s32.totalorder %s22, 0
      %p142 = por %p140, %p141
      %p143 = scmp.ne.s32.totalorder %s129, %s130
      %p144 = scmp.eq.s32.totalorder %s23, 1
      %p145 = por %p143, %p144
      %p147 = scmp.ne.s32.totalorder %s130, %s146
      %p148 = scmp.eq.s32.totalorder %s23, 0
      %p149 = por %p147, %p148
      %p150 = scmp.le.s32.totalorder 1, %s17
      %p151 = scmp.lt.s32.totalorder %s17, 3
      %p152 = pnand %p150, %p151
      %p153 = pneg %p152
      // Predicated region
      $region9: #{tpu_custom_call.1} parent=5 // pred_check
        _
      $region10: #{tpu_custom_call.1} parent=5 // pred_check_branch
        %155 = sbr.rel (%p152) target = $region12
      $region11: #{tpu_custom_call.1} parent=5 // pred_region
        %s156 = ssub.s32 %s17, 1
        // Predicated region
        $region13: #{tpu_custom_call.1} parent=11 // pred_check
          %p157 = pneg %p38
        $region14: #{tpu_custom_call.1} parent=11 // pred_check_branch
          %159 = sbr.rel (%p157) target = $region16
        $region15: #{tpu_custom_call.1} parent=11 // pred_region
          %161 = vsyncadd [#allocation3], 0
          %s163 = sshll.u32 %s0, 4
          %s164 = int_to_ptr.hbm [resolvable:$true] %s163
          %s165 = sshll.u32 [#allocation2], 4
          %s166 = int_to_ptr.vmem [resolvable:$true] %s165
          %168 = dma.hbm_to_vmem [thread:$0]  %s164, 64, %s166, [#allocation3]
        $region16: #{tpu_custom_call.1} parent=11 // pred_fallthru
          _
      $region12: #{tpu_custom_call.1} parent=5 // pred_fallthru
        _
      %p169 = scmp.lt.s32.totalorder %s17, 2
      // Predicated region
      $region17: #{tpu_custom_call.1} parent=5 // pred_check
        %p170 = pneg %p169
      $region18: #{tpu_custom_call.1} parent=5 // pred_check_branch
        %172 = sbr.rel (%p170) target = $region20
      $region19: #{tpu_custom_call.1} parent=5 // pred_region
        // Predicated region
        $region21: #{tpu_custom_call.1} parent=19 // pred_check
          %p173 = pneg %p58
        $region22: #{tpu_custom_call.1} parent=19 // pred_check_branch
          %175 = sbr.rel (%p173) target = $region24
        $region23: #{tpu_custom_call.1} parent=19 // pred_region
          %s176 = sand.u32 %s17, 1
          %s177 = scalar_lea.sflag [#allocation6], %s176
          %s178 = sand.u32 %s48, 1
          %s179 = smul.addr %s178, 64
          %s180 = scalar_lea.vmem [#allocation5], %s179
          %182 = vsyncadd %s177, 0
          %s183 = smul.addr %s17, 4
          %s184 = scalar_lea.hbm %s1, %s183
          %s185 = sshll.u32 %s184, 4
          %s186 = int_to_ptr.hbm [resolvable:$true] %s185
          %s187 = sshll.u32 %s180, 4
          %s188 = int_to_ptr.vmem [resolvable:$true] %s187
          %193 = dma.hbm_to_vmem [thread:$0]  %s186, 1024, %s188, %s177, 128, 64, 4
        $region24: #{tpu_custom_call.1} parent=19 // pred_fallthru
          _
        // Predicated region
        $region25: #{tpu_custom_call.1} parent=19 // pred_check
          %p194 = pneg %p84
        $region26: #{tpu_custom_call.1} parent=19 // pred_check_branch
          %196 = sbr.rel (%p194) target = $region28
        $region27: #{tpu_custom_call.1} parent=19 // pred_region
          %s197 = sand.u32 %s17, 1
          %s198 = scalar_lea.sflag [#allocation6], %s197
          %s199 = sand.u32 %s74, 1
          %s200 = scalar_lea.vmem [#allocation7], %s199
          %202 = vsyncadd %s198, 0
          %s203 = scalar_lea.hbm %s2, %s17
          %s205 = sshll.u32 %s203, 4
          %s206 = int_to_ptr.hbm [resolvable:$true] %s205
          %s207 = sshll.u32 %s200, 4
          %s208 = int_to_ptr.vmem [resolvable:$true] %s207
          %210 = dma.hbm_to_vmem [thread:$0]  %s206, 16, %s208, %s198
        $region28: #{tpu_custom_call.1} parent=19 // pred_fallthru
          _
        // Predicated region
        $region29: #{tpu_custom_call.1} parent=19 // pred_check
          %p211 = pneg %p110
        $region30: #{tpu_custom_call.1} parent=19 // pred_check_branch
          %213 = sbr.rel (%p211) target = $region32
        $region31: #{tpu_custom_call.1} parent=19 // pred_region
          %p214 = scmp.lt.s32.totalorder %s17, 1
          %s215 = scalar_select %p214, %s17, 1
          %s216 = scalar_lea.vmem %s3, %s215
        $region32: #{tpu_custom_call.1} parent=19 // pred_fallthru
          _
      $region20: #{tpu_custom_call.1} parent=5 // pred_fallthru
        _
      %p217 = scmp.le.s32.totalorder 1, %s17
      %p218 = scmp.lt.s32.totalorder %s17, 3
      %p219 = pnand %p217, %p218
      %p220 = pneg %p219
      // Predicated region
      $region33: #{tpu_custom_call.1} parent=5 // pred_check
        _
      $region34: #{tpu_custom_call.1} parent=5 // pred_check_branch
        %222 = sbr.rel (%p219) target = $region36
      $region35: #{tpu_custom_call.1} parent=5 // pred_region
        %s223 = ssub.s32 %s17, 1
        // Predicated region
        $region37: #{tpu_custom_call.1} parent=35 // pred_check
          %p224 = pneg %p38
        $region38: #{tpu_custom_call.1} parent=35 // pred_check_branch
          %226 = sbr.rel (%p224) target = $region40
        $region39: #{tpu_custom_call.1} parent=35 // pred_region
          %228 = dma.done [#allocation3], 64
        $region40: #{tpu_custom_call.1} parent=35 // pred_fallthru
          _
        %s229 = sand.u32 %s22, 1
        %s230 = scalar_lea.sflag [#allocation6], %s229
        %s231 = sand.u32 %s51, 1
        %s232 = smul.addr %s231, 64
        %s233 = scalar_lea.vmem [#allocation5], %s232
        // Predicated region
        $region41: #{tpu_custom_call.1} parent=35 // pred_check
          %p234 = pneg %p64
        $region42: #{tpu_custom_call.1} parent=35 // pred_check_branch
          %236 = sbr.rel (%p234) target = $region44
        $region43: #{tpu_custom_call.1} parent=35 // pred_region
          %238 = dma.done %s230, 1024
        $region44: #{tpu_custom_call.1} parent=35 // pred_fallthru
          _
        %s239 = sand.u32 %s22, 1
        %s240 = scalar_lea.sflag [#allocation6], %s239
        %s241 = sand.u32 %s77, 1
        %s242 = scalar_lea.vmem [#allocation7], %s241
        // Predicated region
        $region45: #{tpu_custom_call.1} parent=35 // pred_check
          %p243 = pneg %p90
        $region46: #{tpu_custom_call.1} parent=35 // pred_check_branch
          %245 = sbr.rel (%p243) target = $region48
        $region47: #{tpu_custom_call.1} parent=35 // pred_region
          %247 = dma.done %s240, 16
        $region48: #{tpu_custom_call.1} parent=35 // pred_fallthru
          _
        %p248 = pneg %p38
        %p249 = pneg %p35
        %s250 = sand.u32 %s22, 1
        %s251 = scalar_lea.sflag [#allocation6], %s250
        %s252 = sand.u32 %s51, 1
        %s253 = smul.addr %s252, 64
        %s254 = scalar_lea.vmem [#allocation5], %s253
        %p255 = pneg %p64
        %p256 = pneg %p61
        %s257 = sand.u32 %s22, 1
        %s258 = scalar_lea.sflag [#allocation6], %s257
        %s259 = sand.u32 %s77, 1
        %s260 = scalar_lea.vmem [#allocation7], %s259
        %p261 = pneg %p90
        %p262 = pneg %p87
        %p263 = scmp.lt.s32.totalorder %s22, 1
        %s264 = scalar_select %p263, %s22, 1
        %s265 = scalar_lea.vmem %s3, %s264
        %p266 = pneg %p116
        %p267 = pneg %p113
        %p268 = pneg %p142
        %p269 = pneg %p139
        %s270 = sand.u32 %s129, 1
        %s271 = scalar_lea.sflag [#allocation4], %s270
        %s272 = sand.u32 %s129, 1
        %s273 = smul.addr %s272, 4
        %s274 = scalar_lea.vmem [#allocation8], %s273
        %p275 = scmp.lt.s32.totalorder %s22, 1
        %s276 = scalar_select %p275, %s22, 1
        %s277 = scalar_lea.vmem %s3, %s276
        %v278 = vld [vmem:[#allocation2] sm:$0xf]
        %v279 = vld [vmem:[%s233] sm:$0xf]
        %v280 = vld [vmem:[%s233 + $0x4] sm:$0xf]
        %v281 = vld [vmem:[%s233 + $0x8] sm:$0xf]
        %v282 = vld [vmem:[%s233 + $0xc] sm:$0xf]
        %v283 = vld [vmem:[%s233 + $0x10] sm:$0xf]
        %v284 = vld [vmem:[%s233 + $0x14] sm:$0xf]
        %v285 = vld [vmem:[%s233 + $0x18] sm:$0xf]
        %v286 = vld [vmem:[%s233 + $0x1c] sm:$0xf]
        %v287 = vld [vmem:[%s233 + $0x20] sm:$0xf]
        %v288 = vld [vmem:[%s233 + $0x24] sm:$0xf]
        %v289 = vld [vmem:[%s233 + $0x28] sm:$0xf]
        %v290 = vld [vmem:[%s233 + $0x2c] sm:$0xf]
        %v291 = vld [vmem:[%s233 + $0x30] sm:$0xf]
        %v292 = vld [vmem:[%s233 + $0x34] sm:$0xf]
        %v293 = vld [vmem:[%s233 + $0x38] sm:$0xf]
        %v294 = vld [vmem:[%s233 + $0x3c] sm:$0xf]
        %v311 = vunpack.c.l.b16 %v279
        %v312 = vunpack.c.l.b16 %v280
        %v313 = vunpack.c.l.b16 %v281
        %v314 = vunpack.c.l.b16 %v282
        %v315 = vunpack.c.l.b16 %v283
        %v316 = vunpack.c.l.b16 %v284
        %v317 = vunpack.c.l.b16 %v285
        %v318 = vunpack.c.l.b16 %v286
        %v319 = vunpack.c.l.b16 %v287
        %v320 = vunpack.c.l.b16 %v288
        %v321 = vunpack.c.l.b16 %v289
        %v322 = vunpack.c.l.b16 %v290
        %v323 = vunpack.c.l.b16 %v291
        %v324 = vunpack.c.l.b16 %v292
        %v325 = vunpack.c.l.b16 %v293
        %v326 = vunpack.c.l.b16 %v294
        %v327 = vpack.c.b16 %v312, %v311
        %v328 = vpack.c.b16 %v314, %v313
        %v329 = vpack.c.b16 %v316, %v315
        %v330 = vpack.c.b16 %v318, %v317
        %v331 = vpack.c.b16 %v320, %v319
        %v332 = vpack.c.b16 %v322, %v321
        %v333 = vpack.c.b16 %v324, %v323
        %v334 = vpack.c.b16 %v326, %v325
        %343 = vmatpush.bf16.msra.mxu0 %v334
        %344 = vmatpush.bf16.msra.mxu0 %v333
        %345 = vmatpush.bf16.msra.mxu0 %v332
        %346 = vmatpush.bf16.msra.mxu0 %v331
        %347 = vmatpush.bf16.msra.mxu0 %v330
        %348 = vmatpush.bf16.msra.mxu0 %v329
        %349 = vmatpush.bf16.msra.mxu0 %v328
        %350 = vmatpush.bf16.msra.mxu0 %v327
        %351 = vmatmul.bf16.gmra.mxu0 %v278
        %v352 = vpop.f32.mrf.mxu0
        %v353 = vadd.f32 0.0, %v352
        %v354 = vpop.f32.mrf.mxu0
        %355 = vdwg.mxu0
        %v356 = vrot.slane %v353, 4
        %v357 = vadd.f32 %v353, %v356
        %v358 = vrot.slane %v357, 2
        %v359 = vadd.f32 %v357, %v358
        %v360 = vrot.slane %v359, 1
        %v361 = vadd.f32 %v359, %v360
        %v362 = vmul.f32 %v361, 0.125
        %v363 = vsub.f32 %v353, %v362
        %v364 = vmul.f32 %v363, %v363
        %v365 = vrot.slane %v364, 4
        %v366 = vadd.f32 %v364, %v365
        %v367 = vrot.slane %v366, 2
        %v368 = vadd.f32 %v366, %v367
        %v369 = vrot.slane %v368, 1
        %v370 = vadd.f32 %v368, %v369
        %v371 = vmul.f32 %v370, 0.125
        %v372 = vld [vmem:[%s242] sm:$0x1]
        %v373 = vadd.f32 %v371, 1e-05
        %v374 = vrsqrt.pop %v373
        %v375 = vmul.f32 %v374, %v373
        %v376 = vmul.f32 %v375, %v374
        %v377 = vmul.f32 0.5, %v376
        %v378 = vsub.f32 1.5, %v377
        %v379 = vmul.f32 %v374, %v378
        %vm380 = vweird.f32 %v373
        %vm381 = vweird.f32 %v374
        %vm382 = vmor %vm380, %vm381
        %v383 = vsel %vm382, %v374, %v379
        %v384 = vmul.f32 %v372, %v383
        %v386 = vperm.slane %v384, 0
        %v388 = vmul.f32 %v363, %v386
        %v389 = vld [vmem:[%s277] sm:$0x1]
        %v391 = vperm.slane %v389, 0
        %v393 = vadd.f32 %v388, %v391
        %v394 = vmax.f32 %v393, 0.0
        %v395 = vpack.c.bf16 %v394, %v394
        %396 = vst [vmem:[%s274] sm:$0xf] %v395
        %s397 = sand.u32 %s129, 1
        %s398 = scalar_lea.sflag [#allocation4], %s397
        %s399 = sand.u32 %s129, 1
        %s400 = smul.addr %s399, 4
        %s401 = scalar_lea.vmem [#allocation8], %s400
        // Predicated region
        $region49: #{tpu_custom_call.1} parent=35 // pred_check
          %p402 = pneg %p139
        $region50: #{tpu_custom_call.1} parent=35 // pred_check_branch
          %404 = sbr.rel (%p402) target = $region52
        $region51: #{tpu_custom_call.1} parent=35 // pred_region
          %406 = vsyncadd %s398, 0
          %s407 = smul.addr %s22, 4
          %s408 = scalar_lea.hbm %s4, %s407
          %s410 = sshll.u32 %s401, 4
          %s411 = int_to_ptr.vmem [resolvable:$true] %s410
          %s412 = sshll.u32 %s408, 4
          %s413 = int_to_ptr.hbm [resolvable:$true] %s412
          %415 = dma.vmem_to_hbm [thread:$0]  %s411, 64, %s413, %s398
        $region52: #{tpu_custom_call.1} parent=35 // pred_fallthru
          _
      $region36: #{tpu_custom_call.1} parent=5 // pred_fallthru
        _
      %p416 = scmp.le.s32.totalorder 2, %s17
      // Predicated region
      $region53: #{tpu_custom_call.1} parent=5 // pred_check
        %p417 = pneg %p416
      $region54: #{tpu_custom_call.1} parent=5 // pred_check_branch
        %419 = sbr.rel (%p417) target = $region56
      $region55: #{tpu_custom_call.1} parent=5 // pred_region
        %s420 = ssub.s32 %s17, 2
        // Predicated region
        $region57: #{tpu_custom_call.1} parent=55 // pred_check
          %p421 = pneg %p145
        $region58: #{tpu_custom_call.1} parent=55 // pred_check_branch
          %423 = sbr.rel (%p421) target = $region60
        $region59: #{tpu_custom_call.1} parent=55 // pred_region
          %s424 = sand.u32 %s130, 1
          %s425 = scalar_lea.sflag [#allocation4], %s424
          %s426 = sand.u32 %s130, 1
          %s427 = smul.addr %s426, 4
          %s428 = scalar_lea.vmem [#allocation8], %s427
          %430 = dma.done %s425, 64
        $region60: #{tpu_custom_call.1} parent=55 // pred_fallthru
          _
      $region56: #{tpu_custom_call.1} parent=5 // pred_fallthru
        _
    $region6: #{tpu_custom_call.1} parent=1 // loop_footer
      %s21 = sadd.s32 1, %s17
    $region7: #{tpu_custom_call.1} parent=1 // loop_footer_branch
      %16 = sbr.rel target = $region3
    $region8: #{tpu_custom_call.1} parent=1 // loop_exit
      _
    %431 = vsyncpa [#allocation3], 1
    %s432 = scalar_lea.sflag [#allocation3], 1
    %433 = vsyncpa %s432, 1
    %434 = vsyncpa [#allocation6], 1
    %s435 = scalar_lea.sflag [#allocation6], 1
    %436 = vsyncpa %s435, 1
    %437 = vsyncpa [#allocation4], 1
    %s438 = scalar_lea.sflag [#allocation4], 1
    %439 = vsyncpa %s438, 1

// kernel: tpu_custom_call.1
$region0: #{tpu_custom_call.1}
  #allocation0 [shape = 'u32[]', space=smem, size = 0x4, offset = 0x4, fixed_abs, tag = 'smem constant byte address 0x4 - core index']
  #allocation1 [shape = 'u32[72,128]{1,0:T(1,128)}', space=vmem, size = 0x9000, scoped, tag = 'internal scratch']
  %s0 = inlined_call_operand.hbm [shape: bf16[8,128], index: 0, kind: input, shape index: {}]
  %s1 = inlined_call_operand.hbm [shape: bf16[128,256], index: 1, kind: input, shape index: {}]
  %s2 = inlined_call_operand.hbm [shape: f32[1,256], index: 2, kind: input, shape index: {}]
  %s3 = inlined_call_operand.vmem [shape: f32[1,256], index: 3, kind: input, shape index: {}]
  %s4 = inlined_call_operand.hbm [shape: bf16[8,256], index: 4, kind: output, shape index: {}]
  %s5 = sld [smem:[#allocation0]]
  $region61: #{tpu_custom_call.1} parent=0
    _
  %s7 = ssub.s32 1, %s5
  %s8 = scalar_select 0, %s7, %s5
  $region1: #{tpu_custom_call.1} parent=0
    #allocation2 [shape = 'u8[2048]{0}', space=vmem, size = 0x800, scoped, tag = 'input window, operand 0, single buffered']
    #allocation3 [shape = 's32[2]{0}', space=sflag, size = 0x8, scoped, tag = 'scoped memory for tpu_custom_call.1']
    #allocation4 [shape = 's32[2]{0}', space=sflag, size = 0x8, scoped, tag = 'scoped memory for tpu_custom_call.1']
    #allocation5 [shape = 'u8[65536]{0}', space=vmem, size = 0x10000, scoped, tag = 'input window, operand 1']
    #allocation6 [shape = 's32[2]{0}', space=sflag, size = 0x8, scoped, tag = 'scoped memory for tpu_custom_call.1']
    #allocation7 [shape = 'u8[1024]{0}', space=vmem, size = 0x400, scoped, tag = 'input window, operand 2']
    #allocation8 [shape = 'u8[4096]{0}', space=vmem, size = 0x1000, scoped, tag = 'output window, operand 0']
    %9 = vsyncpa [#allocation3], 0
    %10 = vsyncpa [#allocation6], 0
    %s11 = scalar_lea.sflag [#allocation6], 1
    %12 = vsyncpa %s11, 0
    %13 = vsyncpa [#allocation4], 0
    %s14 = scalar_lea.sflag [#allocation4], 1
    %15 = vsyncpa %s14, 0
    loop: start=0, step=1, limit=4
    $region2: #{tpu_custom_call.1} parent=1 // loop_pre_header
      _
    $region3: #{tpu_custom_call.1} parent=1 // loop_header
      %s17 = sphi 0, %s21
      %p18 = scmp.ge.s32.totalorder %s17, 4
      %s25 = sphi 0, %s25
      %s27 = sphi 0, %s25
      %s28 = sphi 0, %s27
      %s42 = sphi 0, %s28
      %s48 = sphi 0, %s50
      %s51 = sphi 0, %s48
      %s52 = sphi 0, %s51
      %s68 = sphi 0, %s52
      %s74 = sphi 0, %s76
      %s77 = sphi 0, %s74
      %s78 = sphi 0, %s77
      %s94 = sphi 0, %s78
      %s100 = sphi 0, %s102
      %s103 = sphi 0, %s100
      %s104 = sphi 0, %s103
      %s120 = sphi 0, %s104
      %s126 = sphi 0, %s128
      %s129 = sphi 0, %s126
      %s130 = sphi 0, %s129
      %s146 = sphi 0, %s130
    $region4: #{tpu_custom_call.1} parent=1 // loop_header_branch
      %20 = sbr.rel (%p18) target = $region8
    $region5: #{tpu_custom_call.1} parent=1 // loop_body
      %s22 = ssub.s32 %s17, 1
      %s23 = ssub.s32 %s17, 2
      %s24 = sadd.s32 %s17, 1
      %s26 = sadd.s32 %s25, 1
      %p29 = scmp.eq.s32.totalorder %s17, 1
      %p30 = scmp.ne.s32.totalorder %s25, %s27
      %p31 = scmp.eq.s32.totalorder %s17, 0
      %p32 = por %p30, %p31
      %p33 = scmp.ne.s32.totalorder %s25, %s27
      %p34 = scmp.eq.s32.totalorder %s22, 1
      %p35 = por %p33, %p34
      %p36 = scmp.ne.s32.totalorder %s27, %s28
      %p37 = scmp.eq.s32.totalorder %s22, 0
      %p38 = por %p36, %p37
      %p39 = scmp.ne.s32.totalorder %s27, %s28
      %p40 = scmp.eq.s32.totalorder %s23, 1
      %p41 = por %p39, %p40
      %p43 = scmp.ne.s32.totalorder %s28, %s42
      %p44 = scmp.eq.s32.totalorder %s23, 0
      %p45 = por %p43, %p44
      %s46 = ssub.s32 %s17, %s24
      %p47 = scmp.eq.s32.totalorder %s46, 0
      %s49 = sadd.s32 %s48, 1
      %s50 = scalar_select %p47, %s48, %s49
      %p53 = pneg %p47
      %p54 = scmp.eq.s32.totalorder %s17, 1
      %p55 = por %p53, %p54
      %p56 = scmp.ne.s32.totalorder %s48, %s51
      %p57 = scmp.eq.s32.totalorder %s17, 0
      %p58 = por %p56, %p57
      %p59 = scmp.ne.s32.totalorder %s48, %s51
      %p60 = scmp.eq.s32.totalorder %s22, 1
      %p61 = por %p59, %p60
      %p62 = scmp.ne.s32.totalorder %s51, %s52
      %p63 = scmp.eq.s32.totalorder %s22, 0
      %p64 = por %p62, %p63
      %p65 = scmp.ne.s32.totalorder %s51, %s52
      %p66 = scmp.eq.s32.totalorder %s23, 1
      %p67 = por %p65, %p66
      %p69 = scmp.ne.s32.totalorder %s52, %s68
      %p70 = scmp.eq.s32.totalorder %s23, 0
      %p71 = por %p69, %p70
      %s72 = ssub.s32 %s17, %s24
      %p73 = scmp.eq.s32.totalorder %s72, 0
      %s75 = sadd.s32 %s74, 1
      %s76 = scalar_select %p73, %s74, %s75
      %p79 = pneg %p73
      %p80 = scmp.eq.s32.totalorder %s17, 1
      %p81 = por %p79, %p80
      %p82 = scmp.ne.s32.totalorder %s74, %s77
      %p83 = scmp.eq.s32.totalorder %s17, 0
      %p84 = por %p82, %p83
      %p85 = scmp.ne.s32.totalorder %s74, %s77
      %p86 = scmp.eq.s32.totalorder %s22, 1
      %p87 = por %p85, %p86
      %p88 = scmp.ne.s32.totalorder %s77, %s78
      %p89 = scmp.eq.s32.totalorder %s22, 0
      %p90 = por %p88, %p89
      %p91 = scmp.ne.s32.totalorder %s77, %s78
      %p92 = scmp.eq.s32.totalorder %s23, 1
      %p93 = por %p91, %p92
      %p95 = scmp.ne.s32.totalorder %s78, %s94
      %p96 = scmp.eq.s32.totalorder %s23, 0
      %p97 = por %p95, %p96
      %s98 = ssub.s32 %s17, %s24
      %p99 = scmp.eq.s32.totalorder %s98, 0
      %s101 = sadd.s32 %s100, 1
      %s102 = scalar_select %p99, %s100, %s101
      %p105 = pneg %p99
      %p106 = scmp.eq.s32.totalorder %s17, 1
      %p107 = por %p105, %p106
      %p108 = scmp.ne.s32.totalorder %s100, %s103
      %p109 = scmp.eq.s32.totalorder %s17, 0
      %p110 = por %p108, %p109
      %p111 = scmp.ne.s32.totalorder %s100, %s103
      %p112 = scmp.eq.s32.totalorder %s22, 1
      %p113 = por %p111, %p112
      %p114 = scmp.ne.s32.totalorder %s103, %s104
      %p115 = scmp.eq.s32.totalorder %s22, 0
      %p116 = por %p114, %p115
      %p117 = scmp.ne.s32.totalorder %s103, %s104
      %p118 = scmp.eq.s32.totalorder %s23, 1
      %p119 = por %p117, %p118
      %p121 = scmp.ne.s32.totalorder %s104, %s120
      %p122 = scmp.eq.s32.totalorder %s23, 0
      %p123 = por %p121, %p122
      %s124 = ssub.s32 %s17, %s24
      %p125 = scmp.eq.s32.totalorder %s124, 0
      %s127 = sadd.s32 %s126, 1
      %s128 = scalar_select %p125, %s126, %s127
      %p131 = pneg %p125
      %p132 = scmp.eq.s32.totalorder %s17, 1
      %p133 = por %p131, %p132
      %p134 = scmp.ne.s32.totalorder %s126, %s129
      %p135 = scmp.eq.s32.totalorder %s17, 0
      %p136 = por %p134, %p135
      %p137 = scmp.ne.s32.totalorder %s126, %s129
      %p138 = scmp.eq.s32.totalorder %s22, 1
      %p139 = por %p137, %p138
      %p140 = scmp.ne.s32.totalorder %s129, %s130
      %p141 = scmp.eq.s32.totalorder %s22, 0
      %p142 = por %p140, %p141
      %p143 = scmp.ne.s32.totalorder %s129, %s130
      %p144 = scmp.eq.s32.totalorder %s23, 1
      %p145 = por %p143, %p144
      %p147 = scmp.ne.s32.totalorder %s130, %s146
      %p148 = scmp.eq.s32.totalorder %s23, 0
      %p149 = por %p147, %p148
      %p150 = scmp.le.s32.totalorder 1, %s17
      %p151 = scmp.lt.s32.totalorder %s17, 3
      %p152 = pnand %p150, %p151
      %p153 = pneg %p152
      // Predicated region
      $region9: #{tpu_custom_call.1} parent=5 // pred_check
        _
      $region10: #{tpu_custom_call.1} parent=5 // pred_check_branch
        %155 = sbr.rel (%p152) target = $region12
      $region11: #{tpu_custom_call.1} parent=5 // pred_region
        %s156 = ssub.s32 %s17, 1
        // Predicated region
        $region13: #{tpu_custom_call.1} parent=11 // pred_check
          %p157 = pneg %p38
        $region14: #{tpu_custom_call.1} parent=11 // pred_check_branch
          %159 = sbr.rel (%p157) target = $region16
        $region15: #{tpu_custom_call.1} parent=11 // pred_region
          %161 = vsyncadd [#allocation3], 0
          %s163 = sshll.u32 %s0, 4
          %s164 = int_to_ptr.hbm [resolvable:$true] %s163
          %s165 = sshll.u32 [#allocation2], 4
          %s166 = int_to_ptr.vmem [resolvable:$true] %s165
          %168 = dma.hbm_to_vmem [thread:$0]  %s164, 64, %s166, [#allocation3]
        $region16: #{tpu_custom_call.1} parent=11 // pred_fallthru
          _
      $region12: #{tpu_custom_call.1} parent=5 // pred_fallthru
        _
      %p169 = scmp.lt.s32.totalorder %s17, 2
      // Predicated region
      $region17: #{tpu_custom_call.1} parent=5 // pred_check
        %p170 = pneg %p169
      $region18: #{tpu_custom_call.1} parent=5 // pred_check_branch
        %172 = sbr.rel (%p170) target = $region20
      $region19: #{tpu_custom_call.1} parent=5 // pred_region
        // Predicated region
        $region21: #{tpu_custom_call.1} parent=19 // pred_check
          %p173 = pneg %p58
        $region22: #{tpu_custom_call.1} parent=19 // pred_check_branch
          %175 = sbr.rel (%p173) target = $region24
        $region23: #{tpu_custom_call.1} parent=19 // pred_region
          %s176 = sand.u32 %s17, 1
          %s177 = scalar_lea.sflag [#allocation6], %s176
          %s178 = sand.u32 %s48, 1
          %s179 = smul.addr %s178, 64
          %s180 = scalar_lea.vmem [#allocation5], %s179
          %182 = vsyncadd %s177, 0
          %s183 = smul.addr %s17, 4
          %s184 = scalar_lea.hbm %s1, %s183
          %s185 = sshll.u32 %s184, 4
          %s186 = int_to_ptr.hbm [resolvable:$true] %s185
          %s187 = sshll.u32 %s180, 4
          %s188 = int_to_ptr.vmem [resolvable:$true] %s187
          %193 = dma.hbm_to_vmem [thread:$0]  %s186, 1024, %s188, %s177, 128, 64, 4
        $region24: #{tpu_custom_call.1} parent=19 // pred_fallthru
          _
        // Predicated region
        $region25: #{tpu_custom_call.1} parent=19 // pred_check
          %p194 = pneg %p84
        $region26: #{tpu_custom_call.1} parent=19 // pred_check_branch
          %196 = sbr.rel (%p194) target = $region28
        $region27: #{tpu_custom_call.1} parent=19 // pred_region
          %s197 = sand.u32 %s17, 1
          %s198 = scalar_lea.sflag [#allocation6], %s197
          %s199 = sand.u32 %s74, 1
          %s200 = scalar_lea.vmem [#allocation7], %s199
          %202 = vsyncadd %s198, 0
          %s203 = scalar_lea.hbm %s2, %s17
          %s205 = sshll.u32 %s203, 4
          %s206 = int_to_ptr.hbm [resolvable:$true] %s205
          %s207 = sshll.u32 %s200, 4
          %s208 = int_to_ptr.vmem [resolvable:$true] %s207
          %210 = dma.hbm_to_vmem [thread:$0]  %s206, 16, %s208, %s198
        $region28: #{tpu_custom_call.1} parent=19 // pred_fallthru
          _
        // Predicated region
        $region29: #{tpu_custom_call.1} parent=19 // pred_check
          %p211 = pneg %p110
        $region30: #{tpu_custom_call.1} parent=19 // pred_check_branch
          %213 = sbr.rel (%p211) target = $region32
        $region31: #{tpu_custom_call.1} parent=19 // pred_region
          %p214 = scmp.lt.s32.totalorder %s17, 1
          %s215 = scalar_select %p214, %s17, 1
          %s216 = scalar_lea.vmem %s3, %s215
        $region32: #{tpu_custom_call.1} parent=19 // pred_fallthru
          _
      $region20: #{tpu_custom_call.1} parent=5 // pred_fallthru
        _
      %p217 = scmp.le.s32.totalorder 1, %s17
      %p218 = scmp.lt.s32.totalorder %s17, 3
      %p219 = pnand %p217, %p218
      %p220 = pneg %p219
      // Predicated region
      $region33: #{tpu_custom_call.1} parent=5 // pred_check
        _
      $region34: #{tpu_custom_call.1} parent=5 // pred_check_branch
        %222 = sbr.rel (%p219) target = $region36
      $region35: #{tpu_custom_call.1} parent=5 // pred_region
        %s223 = ssub.s32 %s17, 1
        // Predicated region
        $region37: #{tpu_custom_call.1} parent=35 // pred_check
          %p224 = pneg %p38
        $region38: #{tpu_custom_call.1} parent=35 // pred_check_branch
          %226 = sbr.rel (%p224) target = $region40
        $region39: #{tpu_custom_call.1} parent=35 // pred_region
          %228 = dma.done [#allocation3], 64
        $region40: #{tpu_custom_call.1} parent=35 // pred_fallthru
          _
        %s229 = sand.u32 %s22, 1
        %s230 = scalar_lea.sflag [#allocation6], %s229
        %s231 = sand.u32 %s51, 1
        %s232 = smul.addr %s231, 64
        %s233 = scalar_lea.vmem [#allocation5], %s232
        // Predicated region
        $region41: #{tpu_custom_call.1} parent=35 // pred_check
          %p234 = pneg %p64
        $region42: #{tpu_custom_call.1} parent=35 // pred_check_branch
          %236 = sbr.rel (%p234) target = $region44
        $region43: #{tpu_custom_call.1} parent=35 // pred_region
          %238 = dma.done %s230, 1024
        $region44: #{tpu_custom_call.1} parent=35 // pred_fallthru
          _
        %s239 = sand.u32 %s22, 1
        %s240 = scalar_lea.sflag [#allocation6], %s239
        %s241 = sand.u32 %s77, 1
        %s242 = scalar_lea.vmem [#allocation7], %s241
        // Predicated region
        $region45: #{tpu_custom_call.1} parent=35 // pred_check
          %p243 = pneg %p90
        $region46: #{tpu_custom_call.1} parent=35 // pred_check_branch
          %245 = sbr.rel (%p243) target = $region48
        $region47: #{tpu_custom_call.1} parent=35 // pred_region
          %247 = dma.done %s240, 16
        $region48: #{tpu_custom_call.1} parent=35 // pred_fallthru
          _
        %p248 = pneg %p38
        %p249 = pneg %p35
        %s250 = sand.u32 %s22, 1
        %s251 = scalar_lea.sflag [#allocation6], %s250
        %s252 = sand.u32 %s51, 1
        %s253 = smul.addr %s252, 64
        %s254 = scalar_lea.vmem [#allocation5], %s253
        %p255 = pneg %p64
        %p256 = pneg %p61
        %s257 = sand.u32 %s22, 1
        %s258 = scalar_lea.sflag [#allocation6], %s257
        %s259 = sand.u32 %s77, 1
        %s260 = scalar_lea.vmem [#allocation7], %s259
        %p261 = pneg %p90
        %p262 = pneg %p87
        %p263 = scmp.lt.s32.totalorder %s22, 1
        %s264 = scalar_select %p263, %s22, 1
        %s265 = scalar_lea.vmem %s3, %s264
        %p266 = pneg %p116
        %p267 = pneg %p113
        %p268 = pneg %p142
        %p269 = pneg %p139
        %s270 = sand.u32 %s129, 1
        %s271 = scalar_lea.sflag [#allocation4], %s270
        %s272 = sand.u32 %s129, 1
        %s273 = smul.addr %s272, 4
        %s274 = scalar_lea.vmem [#allocation8], %s273
        %p275 = scmp.lt.s32.totalorder %s22, 1
        %s276 = scalar_select %p275, %s22, 1
        %s277 = scalar_lea.vmem %s3, %s276
        %v278 = vld [vmem:[#allocation2] sm:$0xf]
        %v279 = vld [vmem:[%s233] sm:$0xf]
        %v280 = vld [vmem:[%s233 + $0x4] sm:$0xf]
        %v281 = vld [vmem:[%s233 + $0x8] sm:$0xf]
        %v282 = vld [vmem:[%s233 + $0xc] sm:$0xf]
        %v283 = vld [vmem:[%s233 + $0x10] sm:$0xf]
        %v284 = vld [vmem:[%s233 + $0x14] sm:$0xf]
        %v285 = vld [vmem:[%s233 + $0x18] sm:$0xf]
        %v286 = vld [vmem:[%s233 + $0x1c] sm:$0xf]
        %v287 = vld [vmem:[%s233 + $0x20] sm:$0xf]
        %v288 = vld [vmem:[%s233 + $0x24] sm:$0xf]
        %v289 = vld [vmem:[%s233 + $0x28] sm:$0xf]
        %v290 = vld [vmem:[%s233 + $0x2c] sm:$0xf]
        %v291 = vld [vmem:[%s233 + $0x30] sm:$0xf]
        %v292 = vld [vmem:[%s233 + $0x34] sm:$0xf]
        %v293 = vld [vmem:[%s233 + $0x38] sm:$0xf]
        %v294 = vld [vmem:[%s233 + $0x3c] sm:$0xf]
        %v311 = vunpack.c.l.b16 %v279
        %v312 = vunpack.c.l.b16 %v280
        %v313 = vunpack.c.l.b16 %v281
        %v314 = vunpack.c.l.b16 %v282
        %v315 = vunpack.c.l.b16 %v283
        %v316 = vunpack.c.l.b16 %v284
        %v317 = vunpack.c.l.b16 %v285
        %v318 = vunpack.c.l.b16 %v286
        %v319 = vunpack.c.l.b16 %v287
        %v320 = vunpack.c.l.b16 %v288
        %v321 = vunpack.c.l.b16 %v289
        %v322 = vunpack.c.l.b16 %v290
        %v323 = vunpack.c.l.b16 %v291
        %v324 = vunpack.c.l.b16 %v292
        %v325 = vunpack.c.l.b16 %v293
        %v326 = vunpack.c.l.b16 %v294
        %v327 = vpack.c.b16 %v312, %v311
        %v328 = vpack.c.b16 %v314, %v313
        %v329 = vpack.c.b16 %v316, %v315
        %v330 = vpack.c.b16 %v318, %v317
        %v331 = vpack.c.b16 %v320, %v319
        %v332 = vpack.c.b16 %v322, %v321
        %v333 = vpack.c.b16 %v324, %v323
        %v334 = vpack.c.b16 %v326, %v325
        %343 = vmatpush.bf16.msra.mxu0 %v334
        %344 = vmatpush.bf16.msra.mxu0 %v333
        %345 = vmatpush.bf16.msra.mxu0 %v332
        %346 = vmatpush.bf16.msra.mxu0 %v331
        %347 = vmatpush.bf16.msra.mxu0 %v330
        %348 = vmatpush.bf16.msra.mxu0 %v329
        %349 = vmatpush.bf16.msra.mxu0 %v328
        %350 = vmatpush.bf16.msra.mxu0 %v327
        %351 = vmatmul.bf16.gmra.mxu0 %v278
        %v352 = vpop.f32.mrf.mxu0
        %v353 = vadd.f32 0.0, %v352
        %v354 = vpop.f32.mrf.mxu0
        %355 = vdwg.mxu0
        %v356 = vrot.slane %v353, 4
        %v357 = vadd.f32 %v353, %v356
        %v358 = vrot.slane %v357, 2
        %v359 = vadd.f32 %v357, %v358
        %v360 = vrot.slane %v359, 1
        %v361 = vadd.f32 %v359, %v360
        %v362 = vmul.f32 %v361, 0.125
        %v363 = vsub.f32 %v353, %v362
        %v364 = vmul.f32 %v363, %v363
        %v365 = vrot.slane %v364, 4
        %v366 = vadd.f32 %v364, %v365
        %v367 = vrot.slane %v366, 2
        %v368 = vadd.f32 %v366, %v367
        %v369 = vrot.slane %v368, 1
        %v370 = vadd.f32 %v368, %v369
        %v371 = vmul.f32 %v370, 0.125
        %v372 = vld [vmem:[%s242] sm:$0x1]
        %v373 = vadd.f32 %v371, 1e-05
        %v374 = vrsqrt.pop %v373
        %v375 = vmul.f32 %v374, %v373
        %v376 = vmul.f32 %v375, %v374
        %v377 = vmul.f32 0.5, %v376
        %v378 = vsub.f32 1.5, %v377
        %v379 = vmul.f32 %v374, %v378
        %vm380 = vweird.f32 %v373
        %vm381 = vweird.f32 %v374
        %vm382 = vmor %vm380, %vm381
        %v383 = vsel %vm382, %v374, %v379
        %v384 = vmul.f32 %v372, %v383
        %v386 = vperm.slane %v384, 0
        %v388 = vmul.f32 %v363, %v386
        %v389 = vld [vmem:[%s277] sm:$0x1]
        %v391 = vperm.slane %v389, 0
        %v393 = vadd.f32 %v388, %v391
        %v394 = vmax.f32 %v393, 0.0
        %v395 = vpack.c.bf16 %v394, %v394
        %396 = vst [vmem:[%s274] sm:$0xf] %v395
        %s397 = sand.u32 %s129, 1
        %s398 = scalar_lea.sflag [#allocation4], %s397
        %s399 = sand.u32 %s129, 1
        %s400 = smul.addr %s399, 4
        %s401 = scalar_lea.vmem [#allocation8], %s400
        // Predicated region
        $region49: #{tpu_custom_call.1} parent=35 // pred_check
          %p402 = pneg %p139
        $region50: #{tpu_custom_call.1} parent=35 // pred_check_branch
          %404 = sbr.rel (%p402) target = $region52
        $region51: #{tpu_custom_call.1} parent=35 // pred_region
          %406 = vsyncadd %s398, 0
          %s407 = smul.addr %s22, 4
          %s408 = scalar_lea.hbm %s4, %s407
          %s410 = sshll.u32 %s401, 4
          %s411 = int_to_ptr.vmem [resolvable:$true] %s410
          %s412 = sshll.u32 %s408, 4
          %s413 = int_to_ptr.hbm [resolvable:$true] %s412
          %415 = dma.vmem_to_hbm [thread:$0]  %s411, 64, %s413, %s398
        $region52: #{tpu_custom_call.1} parent=35 // pred_fallthru
          _
      $region36: #{tpu_custom_call.1} parent=5 // pred_fallthru
        _
      %p416 = scmp.le.s32.totalorder 2, %s17
      // Predicated region
      $region53: #{tpu_custom_call.1} parent=5 // pred_check
        %p417 = pneg %p416
      $region54: #{tpu_custom_call.1} parent=5 // pred_check_branch
        %419 = sbr.rel (%p417) target = $region56
      $region55: #{tpu_custom_call.1} parent=5 // pred_region
        %s420 = ssub.s32 %s17, 2
        // Predicated region
        $region57: #{tpu_custom_call.1} parent=55 // pred_check
          %p421 = pneg %p145
        $region58: #{tpu_custom_call.1} parent=55 // pred_check_branch
          %423 = sbr.rel (%p421) target = $region60
        $region59: #{tpu_custom_call.1} parent=55 // pred_region
          %s424 = sand.u32 %s130, 1
          %s425 = scalar_lea.sflag [#allocation4], %s424
          %s426 = sand.u32 %s130, 1
          %s427 = smul.addr %s426, 4
          %s428 = scalar_lea.vmem [#allocation8], %s427
          %430 = dma.done %s425, 64
        $region60: #{tpu_custom_call.1} parent=55 // pred_fallthru
          _
      $region56: #{tpu_custom_call.1} parent=5 // pred_fallthru
        _
    $region6: #{tpu_custom_call.1} parent=1 // loop_footer
      %s21 = sadd.s32 1, %s17
    $region7: #{tpu_custom_call.1} parent=1 // loop_footer_branch
      %16 = sbr.rel target = $region3
    $region8: #{tpu_custom_call.1} parent=1 // loop_exit
      _
    %431 = vsyncpa [#allocation3], 1
    %s432 = scalar_lea.sflag [#allocation3], 1
    %433 = vsyncpa %s432, 1
    %434 = vsyncpa [#allocation6], 1
    %s435 = scalar_lea.sflag [#allocation6], 1
    %436 = vsyncpa %s435, 1
    %437 = vsyncpa [#allocation4], 1
    %s438 = scalar_lea.sflag [#allocation4], 1
    %439 = vsyncpa %s438, 1

</llo_original>
